<compile_context>
chip_gen: v5e
topology: v5e:2x2
jax: 0.10.0
libtpu: 0.0.40
codegen_flags: <defaults>
</compile_context>

<pallas_src>
import functools

import jax
import jax.numpy as jnp
from jax.experimental import pallas as pl
from jax.experimental.pallas import tpu as pltpu


def _round_up(x, m):
    return ((x + m - 1) // m) * m


# ----------------------------------------------------------------------------
# Fused conv1d kernel (one (C_out, tl) output tile per grid step)
# ----------------------------------------------------------------------------
def _conv1d_kernel(xm_ref, xh_ref, w_ref, b_ref, o_ref, *, K, activation):
    xm = xm_ref[0]                                   # (C_in, tl) current tile
    tl = xm.shape[-1]

    if K > 1:
        # Halo = next lane-tile (clamped at the last tile; the lanes it can
        # corrupt are all >= L_out and are trimmed by the wrapper).
        window = jnp.concatenate([xm, xh_ref[0]], axis=-1)   # (C_in, 2*tl), aligned concat
        # im2col: K lane-shifted views stacked on the contraction (sublane) axis.
        rhs = jnp.concatenate([window[:, j:j + tl] for j in range(K)], axis=0)
    else:
        rhs = xm                                     # (K*C_in, tl) == (C_in, tl)

    # Single fused MXU contraction over K*C_in, f32 accumulation.
    acc = jnp.dot(w_ref[...], rhs, preferred_element_type=jnp.float32)  # (C_out, tl)
    acc = acc + b_ref[...]                           # (C_out, 1) broadcast over lanes

    if activation == "relu":
        acc = jnp.maximum(acc, 0.0)
    elif activation == "sigmoid":
        acc = jax.nn.sigmoid(acc)
    elif activation == "lrelu":
        # TODO(synk): negative slope hard-coded to 0.01 (PyTorch LeakyReLU default);
        # adjust if the model uses 0.2.
        acc = jnp.where(acc > 0, acc, 0.01 * acc)

    o_ref[0] = acc.astype(o_ref.dtype)


# ----------------------------------------------------------------------------
# Spectral norm (PyTorch nn.utils.spectral_norm, n_power_iterations=1)
# ----------------------------------------------------------------------------
def _spectral_norm(weight, u, eps=1e-12):
    w_mat = weight.reshape(weight.shape[0], -1)              # (C_out, C_in*K)
    v = w_mat.T @ u
    v = v / (jnp.linalg.norm(v) + eps)
    u_new = w_mat @ v
    u_new = u_new / (jnp.linalg.norm(u_new) + eps)
    sigma = u_new @ (w_mat @ v)
    return weight / sigma, u_new


# ----------------------------------------------------------------------------
# Public forward: matches SN_Conv1D_Norm_Act.forward (stride fixed at 1).
# Returns (y, u_new); thread u_new back in as PyTorch's persistent buffer would be.
# ----------------------------------------------------------------------------
def sn_conv1d_norm_act(x, weight, bias, u, *, padding=1, act_fn=None,
                       use_bf16=True, lane_tile_cap=512):
    """x: (B, C_in, L) NCL; weight: (C_out, C_in, K); bias: (C_out,); u: (C_out,)."""
    B, C_in, L = x.shape
    C_out, _, K = weight.shape

    w_sn, u_new = _spectral_norm(weight, u)

    Lp = L + 2 * padding
    L_out = Lp - K + 1                                       # stride = 1

    # Lane tiling of the output length. n_l * tl >= L_out + K - 1 guarantees the
    # clamped-halo lanes of the last tile only ever touch trimmed positions.
    need = L_out + K - 1                                     # == Lp
    tl = min(lane_tile_cap, _round_up(need, 128))            # multiple of 128 (or full dim)
    n_l = pl.cdiv(need, tl)
    Lp_in = n_l * tl

    # Single zero-pad in NCL layout (no transposes anywhere).
    xp = jnp.pad(x, ((0, 0), (0, 0), (padding, Lp_in - L - padding)))
    cdt = jnp.bfloat16 if use_bf16 else jnp.float32
    xp = xp.astype(cdt)
    # TODO(synk): bf16 activations/weights (f32 accumulate) vs. PyTorch's f32
    # end-to-end; set use_bf16=False for bit-closer numerics.

    # W2[co, j*C_in + c] = w_sn[co, c, j]  -- matches the in-kernel im2col stacking.
    w2 = jnp.transpose(w_sn, (0, 2, 1)).reshape(C_out, K * C_in).astype(cdt)
    b2 = bias.astype(jnp.float32).reshape(C_out, 1)

    kernel = functools.partial(_conv1d_kernel, K=K, activation=act_fn)

    y = pl.pallas_call(
        kernel,
        out_shape=jax.ShapeDtypeStruct((B, C_out, Lp_in), x.dtype),
        grid_spec=pltpu.PrefetchScalarGridSpec(
            num_scalar_prefetch=0,
            grid=(B, n_l),
            in_specs=[
                # current lane tile of the padded input
                pl.BlockSpec((1, C_in, tl), lambda b, t: (b, 0, t)),
                # halo source: next lane tile (clamped at the end)
                pl.BlockSpec((1, C_in, tl),
                             lambda b, t: (b, 0, jnp.minimum(t + 1, n_l - 1))),
                # grid-invariant, VMEM-resident (tiny) operands
                pl.BlockSpec((C_out, K * C_in), lambda b, t: (0, 0)),
                pl.BlockSpec((C_out, 1), lambda b, t: (0, 0)),
            ],
            out_specs=pl.BlockSpec((1, C_out, tl), lambda b, t: (b, 0, t)),
        ),
        compiler_params=pltpu.CompilerParams(
            dimension_semantics=("parallel", "parallel"),
            vmem_limit_bytes=32 << 20,   # explicit; actual usage is a few 100 KiB
        ),
    )(xp, xp, w2, b2)

    return y[:, :, :L_out], u_new                            # (B, C_out, L_out) NCL


# ----------------------------------------------------------------------------
# Plain-JAX reference (correctness check only)
# ----------------------------------------------------------------------------
def _reference(x, weight, bias, u, padding, act_fn):
    w, u_new = _spectral_norm(weight, u)
    K = w.shape[2]
    xp = jnp.pad(x, ((0, 0), (0, 0), (padding, padding)))
    L_out = xp.shape[2] - K + 1
    cols = jnp.stack([xp[:, :, j:j + L_out] for j in range(K)], axis=-1)  # (B,Ci,Lo,K)
    y = jnp.einsum('bclk,ock->bol', cols, w) + bias[None, :, None]
    if act_fn == "relu":
        y = jnp.maximum(y, 0.0)
    elif act_fn == "sigmoid":
        y = jax.nn.sigmoid(y)
    elif act_fn == "lrelu":
        y = jnp.where(y > 0, y, 0.01 * y)
    return y, u_new


if __name__ == "__main__":
    key = jax.random.PRNGKey(0)
    kx, kw, kb, ku = jax.random.split(key, 4)

    B, c_in, c_out, L = 2, 16, 32, 16
    ksz, pad = 3, 1

    x = jax.random.normal(kx, (B, c_in, L), jnp.float32)
    weight = 0.01 * jax.random.normal(kw, (c_out, c_in, ksz), jnp.float32)  # init_weights
    bias = 0.01 * jax.random.normal(kb, (c_out,), jnp.float32)
    u = jax.random.normal(ku, (c_out,), jnp.float32)
    u = u / jnp.linalg.norm(u)

    out, u_next = sn_conv1d_norm_act(x, weight, bias, u, padding=pad,
                                     act_fn="relu", use_bf16=True)
    out = jax.block_until_ready(out)

    ref, u_ref = _reference(x, weight, bias, u, pad, "relu")
    err = float(jnp.max(jnp.abs(out - ref)))
    assert out.shape == (B, c_out, L), out.shape
    assert err < 5e-2, f"max abs err {err}"
    assert float(jnp.max(jnp.abs(u_next - u_ref))) < 1e-6
    print("KERNEL_OK")
</pallas_src>

<mosaic_0001>
module attributes {stable_mosaic.version = 11 : i64} {
  func.func @_conv1d_kernel(%arg0: i32, %arg1: i32, %arg2: memref<1x16x128xbf16, #tpu.memory_space<vmem>>, %arg3: memref<1x16x128xbf16, #tpu.memory_space<vmem>>, %arg4: memref<32x48xbf16, #tpu.memory_space<vmem>>, %arg5: memref<32x1xf32, #tpu.memory_space<vmem>>, %arg6: memref<1x32x128xf32, #tpu.memory_space<vmem>>) attributes {dimension_semantics = [#tpu.dimension_semantics<parallel>, #tpu.dimension_semantics<parallel>], iteration_bounds = array<i64: 2, 1>, scalar_prefetch = 0 : i64, scratch_operands = 0 : i64, tpu.core_type = #tpu.core_type<tc>, window_params = [{transform_indices = @transform_0, window_bounds = array<i64: 1, 16, 128>}, {transform_indices = @transform_1, window_bounds = array<i64: 1, 16, 128>}, {pipeline_mode = #tpu.pipeline_mode<synchronous>, transform_indices = @transform_2, window_bounds = array<i64: 32, 48>}, {pipeline_mode = #tpu.pipeline_mode<synchronous>, transform_indices = @transform_3, window_bounds = array<i64: 32, 1>}, {transform_indices = @transform_4, window_bounds = array<i64: 1, 32, 128>}]} {
    %c0 = arith.constant 0 : index
    %c0_0 = arith.constant 0 : index
    %c0_1 = arith.constant 0 : index
    %0 = vector.load %arg2[%c0, %c0_0, %c0_1] : memref<1x16x128xbf16, #tpu.memory_space<vmem>>, vector<1x16x128xbf16>
    %1 = vector.shape_cast %0 : vector<1x16x128xbf16> to vector<16x128xbf16>
    %c0_2 = arith.constant 0 : index
    %c0_3 = arith.constant 0 : index
    %c0_4 = arith.constant 0 : index
    %2 = vector.load %arg3[%c0_2, %c0_3, %c0_4] : memref<1x16x128xbf16, #tpu.memory_space<vmem>>, vector<1x16x128xbf16>
    %3 = vector.shape_cast %2 : vector<1x16x128xbf16> to vector<16x128xbf16>
    %4 = tpu.concatenate %1, %3 in 1 : vector<16x128xbf16>, vector<16x128xbf16> -> vector<16x256xbf16>
    %5 = vector.extract_strided_slice %4 {offsets = [0, 0], sizes = [16, 128], strides = [1, 1]} : vector<16x256xbf16> to vector<16x128xbf16>
    %6 = vector.extract_strided_slice %4 {offsets = [0, 1], sizes = [16, 128], strides = [1, 1]} : vector<16x256xbf16> to vector<16x128xbf16>
    %7 = vector.extract_strided_slice %4 {offsets = [0, 2], sizes = [16, 128], strides = [1, 1]} : vector<16x256xbf16> to vector<16x128xbf16>
    %8 = tpu.concatenate %5, %6, %7 in 0 : vector<16x128xbf16>, vector<16x128xbf16>, vector<16x128xbf16> -> vector<48x128xbf16>
    %c0_5 = arith.constant 0 : index
    %c0_6 = arith.constant 0 : index
    %9 = vector.load %arg4[%c0_5, %c0_6] : memref<32x48xbf16, #tpu.memory_space<vmem>>, vector<32x48xbf16>
    %cst = arith.constant dense<0.000000e+00> : vector<32x128xf32>
    %10 = tpu.matmul %9, %8, %cst {dimension_numbers = #tpu.dot_dimension_numbers<[1], [0], [0], [1], [0, 0, 1, 1], [], []>} : vector<32x48xbf16>, vector<48x128xbf16>, vector<32x128xf32> -> vector<32x128xf32>
    %c0_7 = arith.constant 0 : index
    %c0_8 = arith.constant 0 : index
    %11 = vector.load %arg5[%c0_7, %c0_8] : memref<32x1xf32, #tpu.memory_space<vmem>>, vector<32x1xf32>
    %12 = vector.broadcast %11 : vector<32x1xf32> to vector<32x128xf32>
    %13 = arith.addf %10, %12 : vector<32x128xf32>
    %cst_9 = arith.constant 0.000000e+00 : f32
    %14 = vector.broadcast %cst_9 : f32 to vector<32x128xf32>
    %15 = arith.maximumf %13, %14 : vector<32x128xf32>
    %c0_10 = arith.constant 0 : index
    %c0_11 = arith.constant 0 : index
    %c0_12 = arith.constant 0 : index
    %16 = vector.load %arg6[%c0_10, %c0_11, %c0_12] : memref<1x32x128xf32, #tpu.memory_space<vmem>>, vector<1x32x128xf32>
    %17 = vector.shape_cast %16 : vector<1x32x128xf32> to vector<32x128xf32>
    %18 = vector.shape_cast %15 : vector<32x128xf32> to vector<1x32x128xf32>
    tpu.vector_store %arg6[%c0_10, %c0_11, %c0_12], %18 {strides = array<i32>} : memref<1x32x128xf32, #tpu.memory_space<vmem>>, vector<1x32x128xf32>,
    return
  }
  func.func @transform_0(%arg0: i32, %arg1: i32) -> (i32, i32, i32) {
    %c0_i32 = arith.constant 0 : i32
    %c0_i32_0 = arith.constant 0 : i32
    return %arg0, %c0_i32, %arg1 : i32, i32, i32
  }
  func.func @transform_1(%arg0: i32, %arg1: i32) -> (i32, i32, i32) {
    %c1_i32 = arith.constant 1 : i32
    %0 = arith.addi %arg1, %c1_i32 : i32
    %c0_i32 = arith.constant 0 : i32
    %1 = arith.minsi %0, %c0_i32 : i32
    %c0_i32_0 = arith.constant 0 : i32
    %c0_i32_1 = arith.constant 0 : i32
    return %arg0, %c0_i32_0, %1 : i32, i32, i32
  }
  func.func @transform_2(%arg0: i32, %arg1: i32) -> (i32, i32) {
    %c0_i32 = arith.constant 0 : i32
    %c0_i32_0 = arith.constant 0 : i32
    %c0_i32_1 = arith.constant 0 : i32
    return %c0_i32, %c0_i32_0 : i32, i32
  }
  func.func @transform_3(%arg0: i32, %arg1: i32) -> (i32, i32) {
    %c0_i32 = arith.constant 0 : i32
    %c0_i32_0 = arith.constant 0 : i32
    %c0_i32_1 = arith.constant 0 : i32
    return %c0_i32, %c0_i32_0 : i32, i32
  }
  func.func @transform_4(%arg0: i32, %arg1: i32) -> (i32, i32, i32) {
    %c0_i32 = arith.constant 0 : i32
    %c0_i32_0 = arith.constant 0 : i32
    return %arg0, %c0_i32, %arg1 : i32, i32, i32
  }
}

</mosaic_0001>

<llo_original>
// kernel: tpu_custom_call.1
$region0: #{tpu_custom_call.1}
  #allocation0 [shape = 'u32[]', space=smem, size = 0x4, offset = 0x4, fixed_abs, tag = 'smem constant byte address 0x4 - core index']
  #allocation1 [shape = 'u32[72,128]{1,0:T(1,128)}', space=vmem, size = 0x9000, scoped, tag = 'internal scratch']
  %s0 = inlined_call_operand.vmem [shape: bf16[2,16,128], index: 0, kind: input, shape index: {}]
  %s1 = inlined_call_operand.vmem [shape: bf16[2,16,128], index: 1, kind: input, shape index: {}]
  %s2 = inlined_call_operand.hbm [shape: bf16[32,48], index: 2, kind: input, shape index: {}]
  %s3 = inlined_call_operand.vmem [shape: f32[32,1], index: 3, kind: input, shape index: {}]
  %s4 = inlined_call_operand.hbm [shape: f32[2,32,128], index: 4, kind: output, shape index: {}]
  %s5 = sld [smem:[#allocation0]]
  $region53: #{tpu_custom_call.1} parent=0
    _
  %s7 = ssub.s32 1, %s5
  %s8 = scalar_select 0, %s7, %s5
  $region1: #{tpu_custom_call.1} parent=0
    #allocation2 [shape = 'u8[8192]{0}', space=vmem, size = 0x2000, scoped, tag = 'input window, operand 2, single buffered']
    #allocation3 [shape = 's32[2]{0}', space=sflag, size = 0x8, scoped, tag = 'scoped memory for tpu_custom_call.1']
    #allocation4 [shape = 's32[2]{0}', space=sflag, size = 0x8, scoped, tag = 'scoped memory for tpu_custom_call.1']
    #allocation5 [shape = 'u8[32768]{0}', space=vmem, size = 0x8000, scoped, tag = 'output window, operand 0']
    %9 = vsyncpa [#allocation3], 0
    %10 = vsyncpa [#allocation4], 0
    %s11 = scalar_lea.sflag [#allocation4], 1
    %12 = vsyncpa %s11, 0
    loop: start=0, step=1, limit=4
    $region2: #{tpu_custom_call.1} parent=1 // loop_pre_header
      _
    $region3: #{tpu_custom_call.1} parent=1 // loop_header
      %s14 = sphi 0, %s18
      %p15 = scmp.ge.s32.totalorder %s14, 4
      %s21 = sphi 0, %s33
      %s22 = sphi 0, %s29
      %s23 = sphi 0, %s21
      %s24 = sphi 0, %s22
      %s25 = sphi 0, %s23
      %s26 = sphi 0, %s24
      %s38 = sphi 0, %s40
      %s41 = sphi 0, %s38
      %s42 = sphi 0, %s41
      %s58 = sphi 0, %s42
      %s72 = sphi 0, %s74
      %s75 = sphi 0, %s72
      %s76 = sphi 0, %s75
      %s92 = sphi 0, %s76
      %s96 = sphi 0, %s96
      %s98 = sphi 0, %s96
      %s99 = sphi 0, %s98
      %s113 = sphi 0, %s99
      %s117 = sphi 0, %s117
      %s119 = sphi 0, %s117
      %s120 = sphi 0, %s119
      %s134 = sphi 0, %s120
      %s142 = sphi 0, %s144
      %s145 = sphi 0, %s142
      %s146 = sphi 0, %s145
      %s162 = sphi 0, %s146
    $region4: #{tpu_custom_call.1} parent=1 // loop_header_branch
      %17 = sbr.rel (%p15) target = $region8
    $region5: #{tpu_custom_call.1} parent=1 // loop_body
      %s19 = ssub.s32 %s14, 1
      %s20 = ssub.s32 %s14, 2
      %s27 = sadd.s32 1, %s22
      %p28 = scmp.ge.s32.totalorder %s27, 1
      %s29 = scalar_select %p28, 0, %s27
      %s30 = sadd.s32 1, %s21
      %s31 = scalar_select %p28, %s30, %s21
      %p32 = scmp.ge.s32.totalorder %s31, 2
      %s33 = scalar_select %p32, 0, %s31
      %s34 = ssub.s32 %s21, %s33
      %s35 = ssub.s32 %s22, %s29
      %s36 = sor.u32 %s34, %s35
      %p37 = scmp.eq.s32.totalorder %s36, 0
      %s39 = sadd.s32 %s38, 1
      %s40 = scalar_select %p37, %s38, %s39
      %p43 = pneg %p37
      %p44 = scmp.eq.s32.totalorder %s14, 1
      %p45 = por %p43, %p44
      %p46 = scmp.ne.s32.totalorder %s38, %s41
      %p47 = scmp.eq.s32.totalorder %s14, 0
      %p48 = por %p46, %p47
      %p49 = scmp.ne.s32.totalorder %s38, %s41
      %p50 = scmp.eq.s32.totalorder %s19, 1
      %p51 = por %p49, %p50
      %p52 = scmp.ne.s32.totalorder %s41, %s42
      %p53 = scmp.eq.s32.totalorder %s19, 0
      %p54 = por %p52, %p53
      %p55 = scmp.ne.s32.totalorder %s41, %s42
      %p56 = scmp.eq.s32.totalorder %s20, 1
      %p57 = por %p55, %p56
      %p59 = scmp.ne.s32.totalorder %s42, %s58
      %p60 = scmp.eq.s32.totalorder %s20, 0
      %p61 = por %p59, %p60
      %s62 = sadd.s32 %s22, 1
      %p63 = scmp.lt.s32.totalorder %s62, 0
      %s64 = scalar_select %p63, %s62, 0
      %s65 = sadd.s32 %s29, 1
      %p66 = scmp.lt.s32.totalorder %s65, 0
      %s67 = scalar_select %p66, %s65, 0
      %s68 = ssub.s32 %s21, %s33
      %s69 = ssub.s32 %s64, %s67
      %s70 = sor.u32 %s68, %s69
      %p71 = scmp.eq.s32.totalorder %s70, 0
      %s73 = sadd.s32 %s72, 1
      %s74 = scalar_select %p71, %s72, %s73
      %p77 = pneg %p71
      %p78 = scmp.eq.s32.totalorder %s14, 1
      %p79 = por %p77, %p78
      %p80 = scmp.ne.s32.totalorder %s72, %s75
      %p81 = scmp.eq.s32.totalorder %s14, 0
      %p82 = por %p80, %p81
      %p83 = scmp.ne.s32.totalorder %s72, %s75
      %p84 = scmp.eq.s32.totalorder %s19, 1
      %p85 = por %p83, %p84
      %p86 = scmp.ne.s32.totalorder %s75, %s76
      %p87 = scmp.eq.s32.totalorder %s19, 0
      %p88 = por %p86, %p87
      %p89 = scmp.ne.s32.totalorder %s75, %s76
      %p90 = scmp.eq.s32.totalorder %s20, 1
      %p91 = por %p89, %p90
      %p93 = scmp.ne.s32.totalorder %s76, %s92
      %p94 = scmp.eq.s32.totalorder %s20, 0
      %p95 = por %p93, %p94
      %s97 = sadd.s32 %s96, 1
      %p100 = scmp.eq.s32.totalorder %s14, 1
      %p101 = scmp.ne.s32.totalorder %s96, %s98
      %p102 = scmp.eq.s32.totalorder %s14, 0
      %p103 = por %p101, %p102
      %p104 = scmp.ne.s32.totalorder %s96, %s98
      %p105 = scmp.eq.s32.totalorder %s19, 1
      %p106 = por %p104, %p105
      %p107 = scmp.ne.s32.totalorder %s98, %s99
      %p108 = scmp.eq.s32.totalorder %s19, 0
      %p109 = por %p107, %p108
      %p110 = scmp.ne.s32.totalorder %s98, %s99
      %p111 = scmp.eq.s32.totalorder %s20, 1
      %p112 = por %p110, %p111
      %p114 = scmp.ne.s32.totalorder %s99, %s113
      %p115 = scmp.eq.s32.totalorder %s20, 0
      %p116 = por %p114, %p115
      %s118 = sadd.s32 %s117, 1
      %p121 = scmp.eq.s32.totalorder %s14, 1
      %p122 = scmp.ne.s32.totalorder %s117, %s119
      %p123 = scmp.eq.s32.totalorder %s14, 0
      %p124 = por %p122, %p123
      %p125 = scmp.ne.s32.totalorder %s117, %s119
      %p126 = scmp.eq.s32.totalorder %s19, 1
      %p127 = por %p125, %p126
      %p128 = scmp.ne.s32.totalorder %s119, %s120
      %p129 = scmp.eq.s32.totalorder %s19, 0
      %p130 = por %p128, %p129
      %p131 = scmp.ne.s32.totalorder %s119, %s120
      %p132 = scmp.eq.s32.totalorder %s20, 1
      %p133 = por %p131, %p132
      %p135 = scmp.ne.s32.totalorder %s120, %s134
      %p136 = scmp.eq.s32.totalorder %s20, 0
      %p137 = por %p135, %p136
      %s138 = ssub.s32 %s21, %s33
      %s139 = ssub.s32 %s22, %s29
      %s140 = sor.u32 %s138, %s139
      %p141 = scmp.eq.s32.totalorder %s140, 0
      %s143 = sadd.s32 %s142, 1
      %s144 = scalar_select %p141, %s142, %s143
      %p147 = pneg %p141
      %p148 = scmp.eq.s32.totalorder %s14, 1
      %p149 = por %p147, %p148
      %p150 = scmp.ne.s32.totalorder %s142, %s145
      %p151 = scmp.eq.s32.totalorder %s14, 0
      %p152 = por %p150, %p151
      %p153 = scmp.ne.s32.totalorder %s142, %s145
      %p154 = scmp.eq.s32.totalorder %s19, 1
      %p155 = por %p153, %p154
      %p156 = scmp.ne.s32.totalorder %s145, %s146
      %p157 = scmp.eq.s32.totalorder %s19, 0
      %p158 = por %p156, %p157
      %p159 = scmp.ne.s32.totalorder %s145, %s146
      %p160 = scmp.eq.s32.totalorder %s20, 1
      %p161 = por %p159, %p160
      %p163 = scmp.ne.s32.totalorder %s146, %s162
      %p164 = scmp.eq.s32.totalorder %s20, 0
      %p165 = por %p163, %p164
      %p166 = scmp.le.s32.totalorder 1, %s14
      %p167 = scmp.lt.s32.totalorder %s14, 3
      %p168 = pnand %p166, %p167
      %p169 = pneg %p168
      // Predicated region
      $region9: #{tpu_custom_call.1} parent=5 // pred_check
        _
      $region10: #{tpu_custom_call.1} parent=5 // pred_check_branch
        %171 = sbr.rel (%p168) target = $region12
      $region11: #{tpu_custom_call.1} parent=5 // pred_region
        %s172 = ssub.s32 %s14, 1
        // Predicated region
        $region13: #{tpu_custom_call.1} parent=11 // pred_check
          %p173 = pneg %p109
        $region14: #{tpu_custom_call.1} parent=11 // pred_check_branch
          %175 = sbr.rel (%p173) target = $region16
        $region15: #{tpu_custom_call.1} parent=11 // pred_region
          %177 = vsyncadd [#allocation3], 0
          %s178 = sshll.u32 %s2, 4
          %s179 = int_to_ptr.hbm [resolvable:$true] %s178
          %s180 = sshll.u32 [#allocation2], 4
          %s181 = int_to_ptr.vmem [resolvable:$true] %s180
          %186 = dma.hbm_to_vmem [thread:$0]  %s179, 256, %s181, [#allocation3], 64, 64, 4
        $region16: #{tpu_custom_call.1} parent=11 // pred_fallthru
          _
        // Predicated region
        $region17: #{tpu_custom_call.1} parent=11 // pred_check
          %p187 = pneg %p130
        $region18: #{tpu_custom_call.1} parent=11 // pred_check_branch
          %189 = sbr.rel (%p187) target = $region20
        $region19: #{tpu_custom_call.1} parent=11 // pred_region
          _
        $region20: #{tpu_custom_call.1} parent=11 // pred_fallthru
          _
      $region12: #{tpu_custom_call.1} parent=5 // pred_fallthru
        _
      %p190 = scmp.lt.s32.totalorder %s14, 2
      // Predicated region
      $region21: #{tpu_custom_call.1} parent=5 // pred_check
        %p191 = pneg %p190
      $region22: #{tpu_custom_call.1} parent=5 // pred_check_branch
        %193 = sbr.rel (%p191) target = $region24
      $region23: #{tpu_custom_call.1} parent=5 // pred_region
        // Predicated region
        $region25: #{tpu_custom_call.1} parent=23 // pred_check
          %p194 = pneg %p48
        $region26: #{tpu_custom_call.1} parent=23 // pred_check_branch
          %196 = sbr.rel (%p194) target = $region28
        $region27: #{tpu_custom_call.1} parent=23 // pred_region
          %p197 = scmp.lt.s32.totalorder %s21, 1
          %s198 = scalar_select %p197, %s21, 1
          %p199 = scmp.lt.s32.totalorder %s22, 0
          %s200 = scalar_select %p199, %s22, 0
          %s201 = smul.addr %s198, 2
          %s202 = sadd.s32 %s200, %s201
          %s203 = smul.addr %s202, 4
          %s204 = scalar_lea.vmem %s0, %s203
        $region28: #{tpu_custom_call.1} parent=23 // pred_fallthru
          _
        // Predicated region
        $region29: #{tpu_custom_call.1} parent=23 // pred_check
          %p205 = pneg %p82
        $region30: #{tpu_custom_call.1} parent=23 // pred_check_branch
          %207 = sbr.rel (%p205) target = $region32
        $region31: #{tpu_custom_call.1} parent=23 // pred_region
          %s208 = sadd.s32 %s22, 1
          %p209 = scmp.lt.s32.totalorder %s208, 0
          %s210 = scalar_select %p209, %s208, 0
          %p211 = scmp.lt.s32.totalorder %s21, 1
          %s212 = scalar_select %p211, %s21, 1
          %p213 = scmp.lt.s32.totalorder %s210, 0
          %s214 = scalar_select %p213, %s210, 0
          %s215 = smul.addr %s212, 2
          %s216 = sadd.s32 %s214, %s215
          %s217 = smul.addr %s216, 4
          %s218 = scalar_lea.vmem %s1, %s217
          %s219 = sadd.s32 %s22, 1
          %p220 = scmp.lt.s32.totalorder %s219, 0
          %s221 = scalar_select %p220, %s219, 0
        $region32: #{tpu_custom_call.1} parent=23 // pred_fallthru
          _
      $region24: #{tpu_custom_call.1} parent=5 // pred_fallthru
        _
      %p222 = scmp.le.s32.totalorder 1, %s14
      %p223 = scmp.lt.s32.totalorder %s14, 3
      %p224 = pnand %p222, %p223
      %p225 = pneg %p224
      // Predicated region
      $region33: #{tpu_custom_call.1} parent=5 // pred_check
        _
      $region34: #{tpu_custom_call.1} parent=5 // pred_check_branch
        %227 = sbr.rel (%p224) target = $region36
      $region35: #{tpu_custom_call.1} parent=5 // pred_region
        %s228 = ssub.s32 %s14, 1
        // Predicated region
        $region37: #{tpu_custom_call.1} parent=35 // pred_check
          %p229 = pneg %p109
        $region38: #{tpu_custom_call.1} parent=35 // pred_check_branch
          %231 = sbr.rel (%p229) target = $region40
        $region39: #{tpu_custom_call.1} parent=35 // pred_region
          %233 = dma.done [#allocation3], 256
        $region40: #{tpu_custom_call.1} parent=35 // pred_fallthru
          _
        %p234 = scmp.lt.s32.totalorder %s23, 1
        %s235 = scalar_select %p234, %s23, 1
        %p236 = scmp.lt.s32.totalorder %s24, 0
        %s237 = scalar_select %p236, %s24, 0
        %s238 = smul.addr %s235, 2
        %s239 = sadd.s32 %s237, %s238
        %s240 = smul.addr %s239, 4
        %s241 = scalar_lea.vmem %s0, %s240
        %p242 = pneg %p54
        %p243 = pneg %p51
        %s244 = sadd.s32 %s24, 1
        %p245 = scmp.lt.s32.totalorder %s244, 0
        %s246 = scalar_select %p245, %s244, 0
        %p247 = scmp.lt.s32.totalorder %s23, 1
        %s248 = scalar_select %p247, %s23, 1
        %p249 = scmp.lt.s32.totalorder %s246, 0
        %s250 = scalar_select %p249, %s246, 0
        %s251 = smul.addr %s248, 2
        %s252 = sadd.s32 %s250, %s251
        %s253 = smul.addr %s252, 4
        %s254 = scalar_lea.vmem %s1, %s253
        %p255 = pneg %p88
        %p256 = pneg %p85
        %p257 = pneg %p109
        %p258 = pneg %p106
        %p259 = pneg %p130
        %p260 = pneg %p127
        %p261 = pneg %p158
        %p262 = pneg %p155
        %s263 = sand.u32 %s145, 1
        %s264 = scalar_lea.sflag [#allocation4], %s263
        %s265 = sand.u32 %s145, 1
        %s266 = smul.addr %s265, 32
        %s267 = scalar_lea.vmem [#allocation5], %s266
        %p268 = scmp.lt.s32.totalorder %s23, 1
        %s269 = scalar_select %p268, %s23, 1
        %p270 = scmp.lt.s32.totalorder %s24, 0
        %s271 = scalar_select %p270, %s24, 0
        %s272 = smul.addr %s269, 2
        %s273 = sadd.s32 %s271, %s272
        %s274 = smul.addr %s273, 4
        %s275 = scalar_lea.vmem %s0, %s274
        %s276 = sadd.s32 %s24, 1
        %p277 = scmp.lt.s32.totalorder %s276, 0
        %s278 = scalar_select %p277, %s276, 0
        %p279 = scmp.lt.s32.totalorder %s23, 1
        %s280 = scalar_select %p279, %s23, 1
        %p281 = scmp.lt.s32.totalorder %s278, 0
        %s282 = scalar_select %p281, %s278, 0
        %s283 = smul.addr %s280, 2
        %s284 = sadd.s32 %s282, %s283
        %s285 = smul.addr %s284, 4
        %s286 = scalar_lea.vmem %s1, %s285
        %s287 = sadd.s32 %s24, 1
        %p288 = scmp.lt.s32.totalorder %s287, 0
        %s289 = scalar_select %p288, %s287, 0
        %v291 = vld [vmem:[%s275] sm:$0xf]
        %v292 = vld [vmem:[%s275 + $0x4] sm:$0xf]
        %v293 = vld [vmem:[%s286] sm:$0xf]
        %v294 = vld [vmem:[%s286 + $0x4] sm:$0xf]
        %v297 = vunpack.c.l.b16 %v291
        %v298 = vunpack.c.l.b16 %v292
        %v299 = vpack.c.b16 %v298, %v297
        %v303 = vunpack.c.l.b16 %v293
        %v304 = vunpack.c.l.b16 %v294
        %v305 = vpack.c.b16 %v304, %v303
        %306 = vrot.lane.b32.xlu0 %v299, 127
        %v307 = vpop.permute.xlu0 %306
        %308 = vrot.lane.b32.xlu0 %v305, 127
        %v309 = vpop.permute.xlu0 %308
        %vm310 = vcmask 1039360
        %v311 = vsel %vm310, %v307, %v309
        %313 = vrot.lane.b32.xlu0 %v299, 126
        %v314 = vpop.permute.xlu0 %313
        %315 = vrot.lane.b32.xlu0 %v305, 126
        %v316 = vpop.permute.xlu0 %315
        %vm317 = vcmask 1031168
        %v318 = vsel %vm317, %v314, %v316
        %v320 = vld [vmem:[#allocation2] sm:$0xf]
        %v321 = vld [vmem:[#allocation2 + $0x4] sm:$0xf]
        %v322 = vld [vmem:[#allocation2 + $0x8] sm:$0xf]
        %v323 = vld [vmem:[#allocation2 + $0xc] sm:$0xf]
        %v324 = vld [vmem:[%s3] sm:$0xff]
        %v325 = vld [vmem:[%s3 + $0x8] sm:$0xff]
        %v326 = vld [vmem:[%s3 + $0x10] sm:$0xff]
        %v327 = vld [vmem:[%s3 + $0x18] sm:$0xff]
        %329 = vset.pattern.permute.xlu0 0
        %330 = vperm.xlu0 %329, %v324
        %v331 = vpop.permute.xlu0 %330
        %334 = vset.pattern.permute.xlu0 0
        %335 = vperm.xlu0 %334, %v325
        %v336 = vpop.permute.xlu0 %335
        %339 = vset.pattern.permute.xlu0 0
        %340 = vperm.xlu0 %339, %v326
        %v341 = vpop.permute.xlu0 %340
        %344 = vset.pattern.permute.xlu0 0
        %345 = vperm.xlu0 %344, %v327
        %v346 = vpop.permute.xlu0 %345
        %v352 = vunpack.c.l.b16 %v320
        %v353 = vunpack.c.l.b16 %v321
        %v354 = vunpack.c.l.b16 %v322
        %v355 = vunpack.c.l.b16 %v323
        %v356 = vpack.c.b16 %v353, %v352
        %v357 = vpack.c.b16 %v355, %v354
        %vm358 = vcmask 392192
        %v360 = vsel %vm358, %v356, 0
        %v363 = vsel %vm358, %v357, 0
        %365 = vmatpush.bf16.msra.mxu0 0
        %366 = vmatpush.bf16.msra.mxu0 0
        %367 = vmatpush.bf16.msra.mxu0 0
        %368 = vmatpush.bf16.msra.mxu0 0
        %369 = vmatpush.bf16.msra.mxu0 0
        %370 = vmatpush.bf16.msra.mxu0 %v318
        %371 = vmatpush.bf16.msra.mxu0 %v311
        %372 = vmatpush.bf16.msra.mxu0 %v299
        %373 = vmatmul.bf16.gmra.mxu0 %v360
        %v374 = vpop.f32.mrf.mxu0
        %v375 = vadd.f32 %v331, %v374
        %v376 = vpop.f32.mrf.mxu0
        %v377 = vadd.f32 %v336, %v376
        %378 = vmatmul.bf16.gmra.mxu0 %v363
        %v379 = vpop.f32.mrf.mxu0
        %v380 = vadd.f32 %v341, %v379
        %v381 = vpop.f32.mrf.mxu0
        %v382 = vadd.f32 %v346, %v381
        %383 = vdwg.mxu0
        %v384 = vmax.f32 %v375, 0.0
        %v385 = vmax.f32 %v377, 0.0
        %v386 = vmax.f32 %v380, 0.0
        %v387 = vmax.f32 %v382, 0.0
        %388 = vst [vmem:[%s267] sm:$0xff] %v384
        %389 = vst [vmem:[%s267 + $0x8] sm:$0xff] %v385
        %390 = vst [vmem:[%s267 + $0x10] sm:$0xff] %v386
        %391 = vst [vmem:[%s267 + $0x18] sm:$0xff] %v387
        %s392 = sand.u32 %s145, 1
        %s393 = scalar_lea.sflag [#allocation4], %s392
        %s394 = sand.u32 %s145, 1
        %s395 = smul.addr %s394, 32
        %s396 = scalar_lea.vmem [#allocation5], %s395
        // Predicated region
        $region41: #{tpu_custom_call.1} parent=35 // pred_check
          %p397 = pneg %p155
        $region42: #{tpu_custom_call.1} parent=35 // pred_check_branch
          %399 = sbr.rel (%p397) target = $region44
        $region43: #{tpu_custom_call.1} parent=35 // pred_region
          %401 = vsyncadd %s393, 0
          %s402 = smul.addr %s23, 4
          %s403 = sadd.s32 %s24, %s402
          %s404 = smul.addr %s403, 8
          %s405 = scalar_lea.hbm %s4, %s404
          %s406 = sshll.u32 %s396, 4
          %s407 = int_to_ptr.vmem [resolvable:$true] %s406
          %s408 = sshll.u32 %s405, 4
          %s409 = int_to_ptr.hbm [resolvable:$true] %s408
          %414 = dma.vmem_to_hbm [thread:$0]  %s407, 512, %s409, %s393, 128, 128, 8
        $region44: #{tpu_custom_call.1} parent=35 // pred_fallthru
          _
      $region36: #{tpu_custom_call.1} parent=5 // pred_fallthru
        _
      %p415 = scmp.le.s32.totalorder 2, %s14
      // Predicated region
      $region45: #{tpu_custom_call.1} parent=5 // pred_check
        %p416 = pneg %p415
      $region46: #{tpu_custom_call.1} parent=5 // pred_check_branch
        %418 = sbr.rel (%p416) target = $region48
      $region47: #{tpu_custom_call.1} parent=5 // pred_region
        %s419 = ssub.s32 %s14, 2
        // Predicated region
        $region49: #{tpu_custom_call.1} parent=47 // pred_check
          %p420 = pneg %p161
        $region50: #{tpu_custom_call.1} parent=47 // pred_check_branch
          %422 = sbr.rel (%p420) target = $region52
        $region51: #{tpu_custom_call.1} parent=47 // pred_region
          %s423 = sand.u32 %s146, 1
          %s424 = scalar_lea.sflag [#allocation4], %s423
          %s425 = sand.u32 %s146, 1
          %s426 = smul.addr %s425, 32
          %s427 = scalar_lea.vmem [#allocation5], %s426
          %429 = dma.done %s424, 512
        $region52: #{tpu_custom_call.1} parent=47 // pred_fallthru
          _
      $region48: #{tpu_custom_call.1} parent=5 // pred_fallthru
        _
    $region6: #{tpu_custom_call.1} parent=1 // loop_footer
      %s18 = sadd.s32 1, %s14
    $region7: #{tpu_custom_call.1} parent=1 // loop_footer_branch
      %13 = sbr.rel target = $region3
    $region8: #{tpu_custom_call.1} parent=1 // loop_exit
      _
    %430 = vsyncpa [#allocation3], 1
    %s431 = scalar_lea.sflag [#allocation3], 1
    %432 = vsyncpa %s431, 1
    %433 = vsyncpa [#allocation4], 1
    %s434 = scalar_lea.sflag [#allocation4], 1
    %435 = vsyncpa %s434, 1

</llo_original>
